<compile_context>
chip_gen: v7x
topology: tpu7x:2x2x1
jax: 0.10.0
libtpu: 0.0.40
codegen_flags: <defaults>
</compile_context>

<pallas_src>
import numpy as np
import jax
import jax.numpy as jnp
from jax import lax
from jax.experimental import pallas as pl
from jax.experimental.pallas import tpu as pltpu

_SCALE = 10.0 / np.log(10.0)
_EPS = 1e-8

# rgb2ycbcr_pt (basicsr, BT.601): rows = RGB input channel, cols = output channel.
_W_FULL = np.array([[65.481, -37.797, 112.0],
                    [128.553, -74.203, -93.786],
                    [24.966, 112.0, -18.214]], dtype=np.float64)
_B_FULL = np.array([16.0, 128.0, 128.0], dtype=np.float64)
_W_Y = np.array([[65.481], [128.553], [24.966]], dtype=np.float64)
_B_Y = np.array([16.0], dtype=np.float64)

_KERNEL_DTYPES = (np.dtype(jnp.float32), np.dtype(jnp.bfloat16), np.dtype(jnp.float16))


def _round_up(x, m):
    return -(-x // m) * m


def _make_kernel(weights, t_rows, chunk, k_per_split, rows_valid, needs_mask):
    """Build the kernel with the color-transform columns baked in as constants.

    Kernel block shapes:
      p_ref, t_ref : (1, 3, t_rows, 128)   input tiles, storage dtype
      acc_ref      : (1, 1, 8, 128) f32    resident output block, used directly
                                           as the per-(image, hw-split) accumulator
    """
    cols = [tuple(float(v) for v in weights[:, j]) for j in range(weights.shape[1])]
    n_chunks = t_rows // chunk

    def kernel(p_ref, t_ref, acc_ref):
        k = pl.program_id(2)
        kt = pl.program_id(1) * k_per_split + k          # global hw-tile index

        @pl.when(k == 0)
        def _init():
            acc_ref[0, 0] = jnp.zeros((8, 128), jnp.float32)

        def chunk_partial(r0):
            sl = pl.ds(r0, chunk)
            # Per-channel differences; the rgb2ycbcr bias cancels.  Upcast to
            # f32 inside the kernel so bf16/f16 inputs keep half the HBM bytes.
            d0 = (p_ref[0, 0, sl, :].astype(jnp.float32)
                  - t_ref[0, 0, sl, :].astype(jnp.float32))
            d1 = (p_ref[0, 1, sl, :].astype(jnp.float32)
                  - t_ref[0, 1, sl, :].astype(jnp.float32))
            d2 = (p_ref[0, 2, sl, :].astype(jnp.float32)
                  - t_ref[0, 2, sl, :].astype(jnp.float32))
            # Factored transform: y_j = sum_c W[c, j] * d_c ;  q = sum_j y_j^2.
            q = None
            for w0, w1, w2 in cols:
                y = w0 * d0 + w1 * d1 + w2 * d2
                q = y * y if q is None else q + y * y
            if needs_mask:
                # The globally-last hw block can extend past the array extent:
                # those rows hold garbage and must be zeroed (VPU select).
                row = (kt * t_rows + r0
                       + lax.broadcasted_iota(jnp.int32, (chunk, 128), 0))
                q = jnp.where(row < rows_valid, q, 0.0)
            # Fold chunk rows into (8, 128) per-lane partial sums (pure VALU,
            # tile-aligned reshape).
            return q.reshape(chunk // 8, 8, 128).sum(axis=0)

        if n_chunks == 1:
            part = chunk_partial(0)
        else:
            def body(j, carry):
                return carry + chunk_partial(pl.multiple_of(j * chunk, chunk))
            part = lax.fori_loop(0, n_chunks, body,
                                 jnp.zeros((8, 128), jnp.float32))

        acc_ref[0, 0] += part

    return kernel


def psnr_loss_pallas(pred, target, loss_weight=1.0, toY=False,
                     block_rows=2048, chunk_rows=512, hw_splits=2):
    """Equivalent of PSNRLoss(loss_weight, reduction='mean', toY).forward.

    block_rows : hw tile height in 128-lane rows (2048 -> ~3 MiB f32 blocks;
                 1024 is a reasonable choice on v5e if VMEM is tight elsewhere).
    chunk_rows : in-kernel processing chunk; bounds f32 temporaries to ~1 MiB.
    hw_splits  : split the hw reduction over a second "parallel" grid axis so
                 both v7x TensorCores stay busy when N is small (falls back to
                 1 unless the tile count divides evenly).
    """
    assert pred.shape == target.shape and pred.ndim == 4
    n, c, h, w = pred.shape
    assert c == 3, "rgb2ycbcr expects 3 input channels"
    assert block_rows % 8 == 0 and chunk_rows % 8 == 0
    hw = h * w

    W = _W_Y if toY else _W_FULL                   # (3, c_out)
    c_out = W.shape[1]
    inv_denom = 1.0 / (float(c_out) * float(hw) * 255.0 * 255.0)

    # Keep inputs in their storage dtype through the DMA; promote anything
    # exotic to f32 once.
    def as_kernel_dtype(x):
        return x if np.dtype(x.dtype) in _KERNEL_DTYPES else x.astype(jnp.float32)

    pred = as_kernel_dtype(pred)
    target = as_kernel_dtype(target)
    if pred.dtype != target.dtype:
        pred, target = pred.astype(jnp.float32), target.astype(jnp.float32)
    itemsize = np.dtype(pred.dtype).itemsize
    if itemsize == 2:
        assert block_rows % 16 == 0 and chunk_rows % 16 == 0

    # Lane-dense view (N, C, rows, 128).  hw % 1024 == 0 (typical SR crops) is a
    # zero-copy reshape; otherwise fall back to a zero-pad of BOTH inputs (the
    # pad region then contributes d == 0 to the sum).
    # TODO(synk): a flat-hw BlockSpec + in-kernel lane mask would remove even
    # this fallback copy, at the cost of a sublane-padded (3, BLK) VMEM layout.
    hw_pad = hw if hw % 1024 == 0 else _round_up(hw, 1024)
    rows_valid = hw_pad // 128

    def prep(x):
        x = x.reshape(n, c, hw)
        if hw_pad != hw:
            x = jnp.pad(x, ((0, 0), (0, 0), (0, hw_pad - hw)))
        return x.reshape(n, c, rows_valid, 128)

    pred_p, tgt_p = prep(pred), prep(target)

    # hw tiling: the ragged last block is handled by the in-kernel row mask, so
    # no row padding is ever materialized.
    t_rows = min(block_rows, rows_valid)
    num_k = -(-rows_valid // t_rows)
    needs_mask = (rows_valid % t_rows) != 0

    splits = hw_splits if (hw_splits > 1 and num_k % hw_splits == 0) else 1
    k_per_split = num_k // splits

    chunk = chunk_rows if t_rows % chunk_rows == 0 else t_rows

    kernel = _make_kernel(np.asarray(W, dtype=np.float64), t_rows, chunk,
                          k_per_split, rows_valid, needs_mask)

    # Double-buffered inputs + bounded temporaries; raise the scoped-VMEM limit
    # so the big tiles compile on v5e (16 MiB default) while staying inside
    # v7x's 64 MiB physical VMEM.
    block_bytes = c * t_rows * 128 * itemsize
    vmem_limit = int(min(96 * 2 ** 20,
                         max(32 * 2 ** 20, 4 * block_bytes + 12 * 2 ** 20)))

    cost = pl.CostEstimate(
        flops=int((4 + 7 * c_out) * n * hw),
        transcendentals=0,
        bytes_accessed=int(2 * n * c * hw * itemsize + n * splits * 8 * 128 * 4),
    )

    partial = pl.pallas_call(
        kernel,
        out_shape=jax.ShapeDtypeStruct((n, splits, 8, 128), jnp.float32),
        grid=(n, splits, k_per_split),
        in_specs=[
            pl.BlockSpec((1, c, t_rows, 128),
                         lambda i, s, k: (i, 0, s * k_per_split + k, 0)),
            pl.BlockSpec((1, c, t_rows, 128),
                         lambda i, s, k: (i, 0, s * k_per_split + k, 0)),
        ],
        out_specs=pl.BlockSpec((1, 1, 8, 128), lambda i, s, k: (i, s, 0, 0)),
        compiler_params=pltpu.CompilerParams(
            dimension_semantics=("parallel", "parallel", "arbitrary"),
            vmem_limit_bytes=vmem_limit),
        cost_estimate=cost,
    )(pred_p, tgt_p)

    # N*splits*1024 partial sums -> log / scale / batch mean are free in XLA.
    per_image = jnp.sum(partial.reshape(n, -1), axis=1)        # (N,)
    mse = per_image * inv_denom + _EPS
    return loss_weight * _SCALE * jnp.mean(jnp.log(mse))


def _psnr_loss_ref(pred, target, loss_weight=1.0, toY=False):
    """Pure-JAX reference reproducing the PyTorch module semantics."""
    W = jnp.asarray(_W_Y if toY else _W_FULL, dtype=jnp.float32)
    B = jnp.asarray(_B_Y if toY else _B_FULL, dtype=jnp.float32)

    def conv(x):
        y = jnp.einsum('nchw,ck->nkhw', x.astype(jnp.float32), W)
        return (y + B.reshape(1, -1, 1, 1)) / 255.0

    p, t = conv(pred), conv(target)
    mse = jnp.mean((p - t) ** 2, axis=(1, 2, 3))
    return loss_weight * _SCALE * jnp.mean(jnp.log(mse + _EPS))


if __name__ == "__main__":
    key = jax.random.PRNGKey(0)

    # (shape, dtype, toY, kwargs) — covers single/multi-tile accumulation,
    # zero-copy vs padded-tail layouts, the in-kernel ragged-row mask, the
    # 2-way hw split (v7x megacore), bf16 pass-through and the chunked loop.
    configs = [
        ((2, 3, 16, 16), jnp.float32, False, {}),
        ((2, 3, 16, 16), jnp.float32, True, {}),
        ((2, 3, 64, 64), jnp.float32, False, dict(block_rows=8, hw_splits=2)),
        ((2, 3, 64, 64), jnp.bfloat16, False, {}),
        ((2, 3, 40, 40), jnp.float32, False, {}),
        ((2, 3, 32, 96), jnp.float32, False, dict(block_rows=16, hw_splits=1)),
        ((1, 3, 32, 96), jnp.float32, True, dict(block_rows=16, hw_splits=2)),
        ((2, 3, 64, 64), jnp.float32, False, dict(block_rows=32, chunk_rows=8,
                                                  hw_splits=1)),
    ]

    for shape, dtype, toY, kwargs in configs:
        key, k1, k2 = jax.random.split(key, 3)
        pred = jax.random.uniform(k1, shape, dtype=jnp.float32).astype(dtype)
        target = jax.random.uniform(k2, shape, dtype=jnp.float32).astype(dtype)

        out = jax.block_until_ready(
            psnr_loss_pallas(pred, target, loss_weight=1.0, toY=toY, **kwargs))
        ref = jax.block_until_ready(_psnr_loss_ref(pred, target, 1.0, toY))
        assert np.allclose(np.asarray(out), np.asarray(ref),
                           rtol=2e-4, atol=2e-4), (
            f"mismatch shape={shape} dtype={dtype} toY={toY} {kwargs}: "
            f"pallas={out} ref={ref}")

    print("KERNEL_OK")
</pallas_src>

<mosaic_0001>
module attributes {stable_mosaic.version = 11 : i64} {
  func.func @kernel(%arg0: i32, %arg1: i32, %arg2: i32, %arg3: memref<1x3x8x128xf32, #tpu.memory_space<vmem>>, %arg4: memref<1x3x8x128xf32, #tpu.memory_space<vmem>>, %arg5: memref<1x1x8x128xf32, #tpu.memory_space<vmem>>) attributes {dimension_semantics = [#tpu.dimension_semantics<parallel>, #tpu.dimension_semantics<parallel>, #tpu.dimension_semantics<arbitrary>], iteration_bounds = array<i64: 2, 1, 1>, scalar_prefetch = 0 : i64, scratch_operands = 0 : i64, tpu.core_type = #tpu.core_type<tc>, window_params = [{transform_indices = @transform_0, window_bounds = array<i64: 1, 3, 8, 128>}, {transform_indices = @transform_1, window_bounds = array<i64: 1, 3, 8, 128>}, {transform_indices = @transform_2, window_bounds = array<i64: 1, 1, 8, 128>}]} {
    %c0_i32 = arith.constant 0 : i32
    %0 = arith.cmpi eq, %arg2, %c0_i32 : i32
    %1 = arith.extui %0 : i1 to i32
    %c0_i32_0 = arith.constant 0 : i32
    %2 = arith.cmpi ne, %1, %c0_i32_0 : i32
    scf.if %2 {
      %cst_39 = arith.constant 0.000000e+00 : f32
      %55 = vector.broadcast %cst_39 : f32 to vector<8x128xf32>
      %c0_40 = arith.constant 0 : index
      %c0_41 = arith.constant 0 : index
      %c0_42 = arith.constant 0 : index
      %c0_43 = arith.constant 0 : index
      %56 = vector.load %arg5[%c0_40, %c0_41, %c0_42, %c0_43] : memref<1x1x8x128xf32, #tpu.memory_space<vmem>>, vector<1x1x8x128xf32>
      %57 = vector.shape_cast %56 : vector<1x1x8x128xf32> to vector<8x128xf32>
      %58 = vector.shape_cast %55 : vector<8x128xf32> to vector<1x1x8x128xf32>
      tpu.vector_store %arg5[%c0_40, %c0_41, %c0_42, %c0_43], %58 {strides = array<i32>} : memref<1x1x8x128xf32, #tpu.memory_space<vmem>>, vector<1x1x8x128xf32>,
    } else {
    }
    %c0 = arith.constant 0 : index
    %c0_1 = arith.constant 0 : index
    %c0_2 = arith.constant 0 : index
    %c0_3 = arith.constant 0 : index
    %3 = vector.load %arg3[%c0, %c0_1, %c0_2, %c0_3] : memref<1x3x8x128xf32, #tpu.memory_space<vmem>>, vector<1x1x8x128xf32>
    %4 = vector.shape_cast %3 : vector<1x1x8x128xf32> to vector<8x128xf32>
    %c0_4 = arith.constant 0 : index
    %c0_5 = arith.constant 0 : index
    %c0_6 = arith.constant 0 : index
    %c0_7 = arith.constant 0 : index
    %5 = vector.load %arg4[%c0_4, %c0_5, %c0_6, %c0_7] : memref<1x3x8x128xf32, #tpu.memory_space<vmem>>, vector<1x1x8x128xf32>
    %6 = vector.shape_cast %5 : vector<1x1x8x128xf32> to vector<8x128xf32>
    %7 = arith.subf %4, %6 : vector<8x128xf32>
    %c0_8 = arith.constant 0 : index
    %c1 = arith.constant 1 : index
    %c0_9 = arith.constant 0 : index
    %c0_10 = arith.constant 0 : index
    %8 = vector.load %arg3[%c0_8, %c1, %c0_9, %c0_10] : memref<1x3x8x128xf32, #tpu.memory_space<vmem>>, vector<1x1x8x128xf32>
    %9 = vector.shape_cast %8 : vector<1x1x8x128xf32> to vector<8x128xf32>
    %c0_11 = arith.constant 0 : index
    %c1_12 = arith.constant 1 : index
    %c0_13 = arith.constant 0 : index
    %c0_14 = arith.constant 0 : index
    %10 = vector.load %arg4[%c0_11, %c1_12, %c0_13, %c0_14] : memref<1x3x8x128xf32, #tpu.memory_space<vmem>>, vector<1x1x8x128xf32>
    %11 = vector.shape_cast %10 : vector<1x1x8x128xf32> to vector<8x128xf32>
    %12 = arith.subf %9, %11 : vector<8x128xf32>
    %c0_15 = arith.constant 0 : index
    %c2 = arith.constant 2 : index
    %c0_16 = arith.constant 0 : index
    %c0_17 = arith.constant 0 : index
    %13 = vector.load %arg3[%c0_15, %c2, %c0_16, %c0_17] : memref<1x3x8x128xf32, #tpu.memory_space<vmem>>, vector<1x1x8x128xf32>
    %14 = vector.shape_cast %13 : vector<1x1x8x128xf32> to vector<8x128xf32>
    %c0_18 = arith.constant 0 : index
    %c2_19 = arith.constant 2 : index
    %c0_20 = arith.constant 0 : index
    %c0_21 = arith.constant 0 : index
    %15 = vector.load %arg4[%c0_18, %c2_19, %c0_20, %c0_21] : memref<1x3x8x128xf32, #tpu.memory_space<vmem>>, vector<1x1x8x128xf32>
    %16 = vector.shape_cast %15 : vector<1x1x8x128xf32> to vector<8x128xf32>
    %17 = arith.subf %14, %16 : vector<8x128xf32>
    %cst = arith.constant 6.548100e+01 : f32
    %18 = vector.broadcast %cst : f32 to vector<8x128xf32>
    %19 = arith.mulf %18, %7 : vector<8x128xf32>
    %cst_22 = arith.constant 1.285530e+02 : f32
    %20 = vector.broadcast %cst_22 : f32 to vector<8x128xf32>
    %21 = arith.mulf %20, %12 : vector<8x128xf32>
    %22 = arith.addf %19, %21 : vector<8x128xf32>
    %cst_23 = arith.constant 2.496600e+01 : f32
    %23 = vector.broadcast %cst_23 : f32 to vector<8x128xf32>
    %24 = arith.mulf %23, %17 : vector<8x128xf32>
    %25 = arith.addf %22, %24 : vector<8x128xf32>
    %26 = arith.mulf %25, %25 : vector<8x128xf32>
    %cst_24 = arith.constant -3.779700e+01 : f32
    %27 = vector.broadcast %cst_24 : f32 to vector<8x128xf32>
    %28 = arith.mulf %27, %7 : vector<8x128xf32>
    %cst_25 = arith.constant -7.420300e+01 : f32
    %29 = vector.broadcast %cst_25 : f32 to vector<8x128xf32>
    %30 = arith.mulf %29, %12 : vector<8x128xf32>
    %31 = arith.addf %28, %30 : vector<8x128xf32>
    %cst_26 = arith.constant 1.120000e+02 : f32
    %32 = vector.broadcast %cst_26 : f32 to vector<8x128xf32>
    %33 = arith.mulf %32, %17 : vector<8x128xf32>
    %34 = arith.addf %31, %33 : vector<8x128xf32>
    %35 = arith.mulf %34, %34 : vector<8x128xf32>
    %36 = arith.addf %26, %35 : vector<8x128xf32>
    %cst_27 = arith.constant 1.120000e+02 : f32
    %37 = vector.broadcast %cst_27 : f32 to vector<8x128xf32>
    %38 = arith.mulf %37, %7 : vector<8x128xf32>
    %cst_28 = arith.constant -9.378600e+01 : f32
    %39 = vector.broadcast %cst_28 : f32 to vector<8x128xf32>
    %40 = arith.mulf %39, %12 : vector<8x128xf32>
    %41 = arith.addf %38, %40 : vector<8x128xf32>
    %cst_29 = arith.constant -1.821400e+01 : f32
    %42 = vector.broadcast %cst_29 : f32 to vector<8x128xf32>
    %43 = arith.mulf %42, %17 : vector<8x128xf32>
    %44 = arith.addf %41, %43 : vector<8x128xf32>
    %45 = arith.mulf %44, %44 : vector<8x128xf32>
    %46 = arith.addf %36, %45 : vector<8x128xf32>
    %47 = vector.shape_cast %46 : vector<8x128xf32> to vector<1x8x128xf32>
    %cst_30 = arith.constant dense<0.000000e+00> : vector<8x128xf32>
    %48 = vector.multi_reduction <add>, %47, %cst_30 [0] : vector<1x8x128xf32> to vector<8x128xf32>
    %c0_31 = arith.constant 0 : index
    %c0_32 = arith.constant 0 : index
    %c0_33 = arith.constant 0 : index
    %c0_34 = arith.constant 0 : index
    %49 = vector.load %arg5[%c0_31, %c0_32, %c0_33, %c0_34] : memref<1x1x8x128xf32, #tpu.memory_space<vmem>>, vector<1x1x8x128xf32>
    %50 = vector.shape_cast %49 : vector<1x1x8x128xf32> to vector<8x128xf32>
    %51 = arith.addf %50, %48 : vector<8x128xf32>
    %c0_35 = arith.constant 0 : index
    %c0_36 = arith.constant 0 : index
    %c0_37 = arith.constant 0 : index
    %c0_38 = arith.constant 0 : index
    %52 = vector.load %arg5[%c0_35, %c0_36, %c0_37, %c0_38] : memref<1x1x8x128xf32, #tpu.memory_space<vmem>>, vector<1x1x8x128xf32>
    %53 = vector.shape_cast %52 : vector<1x1x8x128xf32> to vector<8x128xf32>
    %54 = vector.shape_cast %51 : vector<8x128xf32> to vector<1x1x8x128xf32>
    tpu.vector_store %arg5[%c0_35, %c0_36, %c0_37, %c0_38], %54 {strides = array<i32>} : memref<1x1x8x128xf32, #tpu.memory_space<vmem>>, vector<1x1x8x128xf32>,
    return
  }
  func.func @transform_0(%arg0: i32, %arg1: i32, %arg2: i32) -> (i32, i32, i32, i32) {
    %c1_i32 = arith.constant 1 : i32
    %0 = arith.muli %arg1, %c1_i32 : i32
    %1 = arith.addi %0, %arg2 : i32
    %c0_i32 = arith.constant 0 : i32
    %c0_i32_0 = arith.constant 0 : i32
    %c0_i32_1 = arith.constant 0 : i32
    return %arg0, %c0_i32, %1, %c0_i32_0 : i32, i32, i32, i32
  }
  func.func @transform_1(%arg0: i32, %arg1: i32, %arg2: i32) -> (i32, i32, i32, i32) {
    %c1_i32 = arith.constant 1 : i32
    %0 = arith.muli %arg1, %c1_i32 : i32
    %1 = arith.addi %0, %arg2 : i32
    %c0_i32 = arith.constant 0 : i32
    %c0_i32_0 = arith.constant 0 : i32
    %c0_i32_1 = arith.constant 0 : i32
    return %arg0, %c0_i32, %1, %c0_i32_0 : i32, i32, i32, i32
  }
  func.func @transform_2(%arg0: i32, %arg1: i32, %arg2: i32) -> (i32, i32, i32, i32) {
    %c0_i32 = arith.constant 0 : i32
    %c0_i32_0 = arith.constant 0 : i32
    %c0_i32_1 = arith.constant 0 : i32
    return %arg0, %arg1, %c0_i32, %c0_i32_0 : i32, i32, i32, i32
  }
}

</mosaic_0001>

<llo_original>
// kernel: tpu_custom_call.1
$region0: #{tpu_custom_call.1}
  #allocation0 [shape = 'u32[]', space=smem, size = 0x4, offset = 0x4, fixed_abs, tag = 'smem constant byte address 0x4 - core index']
  #allocation1 [shape = 'u32[144,128]{1,0:T(1,128)}', space=vmem, size = 0x12000, scoped, tag = 'internal scratch']
  %s0 = inlined_call_operand.hbm [shape: f32[2,3,8,128], index: 0, kind: input, shape index: {}]
  %s1 = inlined_call_operand.hbm [shape: f32[2,3,8,128], index: 1, kind: input, shape index: {}]
  %s2 = inlined_call_operand.hbm [shape: f32[2,1,8,128], index: 2, kind: output, shape index: {}]
  %s3 = sld [smem:[#allocation0]]
  $region53: #{tpu_custom_call.1} parent=0
    _
  %s5 = ssub.s32 1, %s3
  %s6 = scalar_select 0, %s5, %s3
  $region1: #{tpu_custom_call.1} parent=0
    #allocation2 [shape = 'u8[24576]{0}', space=vmem, size = 0x6000, scoped, tag = 'input window, operand 0']
    #allocation3 [shape = 's32[2]{0}', space=sflag, size = 0x8, scoped, tag = 'scoped memory for tpu_custom_call.1']
    #allocation4 [shape = 's32[2]{0}', space=sflag, size = 0x8, scoped, tag = 'scoped memory for tpu_custom_call.1']
    #allocation5 [shape = 'u8[24576]{0}', space=vmem, size = 0x6000, scoped, tag = 'input window, operand 1']
    #allocation6 [shape = 's32[2]{0}', space=sflag, size = 0x8, scoped, tag = 'scoped memory for tpu_custom_call.1']
    #allocation7 [shape = 'u8[8192]{0}', space=vmem, size = 0x2000, scoped, tag = 'output window, operand 0']
    %7 = vsyncpa [#allocation3], 0
    %s8 = scalar_lea.sflag [#allocation3], 1
    %9 = vsyncpa %s8, 0
    %10 = vsyncpa [#allocation6], 0
    %s11 = scalar_lea.sflag [#allocation6], 1
    %12 = vsyncpa %s11, 0
    %13 = vsyncpa [#allocation4], 0
    %s14 = scalar_lea.sflag [#allocation4], 1
    %15 = vsyncpa %s14, 0
    loop: start=0, step=1, limit=4
    $region2: #{tpu_custom_call.1} parent=1 // loop_pre_header
      _
    $region3: #{tpu_custom_call.1} parent=1 // loop_header
      %s17 = sphi 0, %s21
      %p18 = scmp.ge.s32.totalorder %s17, 4
      %s24 = sphi 0, %s43
      %s25 = sphi 0, %s39
      %s26 = sphi 0, %s35
      %s27 = sphi 0, %s24
      %s28 = sphi 0, %s25
      %s29 = sphi 0, %s26
      %s30 = sphi 0, %s27
      %s31 = sphi 0, %s28
      %s32 = sphi 0, %s29
      %s50 = sphi 0, %s52
      %s53 = sphi 0, %s50
      %s54 = sphi 0, %s53
      %s70 = sphi 0, %s54
      %s80 = sphi 0, %s82
      %s83 = sphi 0, %s80
      %s84 = sphi 0, %s83
      %s100 = sphi 0, %s84
      %s108 = sphi 0, %s110
      %s111 = sphi 0, %s108
      %s112 = sphi 0, %s111
      %s128 = sphi 0, %s112
    $region4: #{tpu_custom_call.1} parent=1 // loop_header_branch
      %20 = sbr.rel (%p18) target = $region8
    $region5: #{tpu_custom_call.1} parent=1 // loop_body
      %s22 = ssub.s32 %s17, 1
      %s23 = ssub.s32 %s17, 2
      %s33 = sadd.s32 1, %s26
      %p34 = scmp.ge.s32.totalorder %s33, 1
      %s35 = scalar_select %p34, 0, %s33
      %s36 = sadd.s32 1, %s25
      %s37 = scalar_select %p34, %s36, %s25
      %p38 = scmp.ge.s32.totalorder %s37, 1
      %s39 = scalar_select %p38, 0, %s37
      %s40 = sadd.s32 1, %s24
      %s41 = scalar_select %p38, %s40, %s24
      %p42 = scmp.ge.s32.totalorder %s41, 2
      %s43 = scalar_select %p42, 0, %s41
      %s44 = sadd.s32 %s25, %s26
      %s45 = sadd.s32 %s39, %s35
      %s46 = ssub.s32 %s24, %s43
      %s47 = ssub.s32 %s44, %s45
      %s48 = sor.u32 %s46, %s47
      %p49 = scmp.eq.s32.totalorder %s48, 0
      %s51 = sadd.s32 %s50, 1
      %s52 = scalar_select %p49, %s50, %s51
      %p55 = pneg %p49
      %p56 = scmp.eq.s32.totalorder %s17, 1
      %p57 = por %p55, %p56
      %p58 = scmp.ne.s32.totalorder %s50, %s53
      %p59 = scmp.eq.s32.totalorder %s17, 0
      %p60 = por %p58, %p59
      %p61 = scmp.ne.s32.totalorder %s50, %s53
      %p62 = scmp.eq.s32.totalorder %s22, 1
      %p63 = por %p61, %p62
      %p64 = scmp.ne.s32.totalorder %s53, %s54
      %p65 = scmp.eq.s32.totalorder %s22, 0
      %p66 = por %p64, %p65
      %p67 = scmp.ne.s32.totalorder %s53, %s54
      %p68 = scmp.eq.s32.totalorder %s23, 1
      %p69 = por %p67, %p68
      %p71 = scmp.ne.s32.totalorder %s54, %s70
      %p72 = scmp.eq.s32.totalorder %s23, 0
      %p73 = por %p71, %p72
      %s74 = sadd.s32 %s25, %s26
      %s75 = sadd.s32 %s39, %s35
      %s76 = ssub.s32 %s24, %s43
      %s77 = ssub.s32 %s74, %s75
      %s78 = sor.u32 %s76, %s77
      %p79 = scmp.eq.s32.totalorder %s78, 0
      %s81 = sadd.s32 %s80, 1
      %s82 = scalar_select %p79, %s80, %s81
      %p85 = pneg %p79
      %p86 = scmp.eq.s32.totalorder %s17, 1
      %p87 = por %p85, %p86
      %p88 = scmp.ne.s32.totalorder %s80, %s83
      %p89 = scmp.eq.s32.totalorder %s17, 0
      %p90 = por %p88, %p89
      %p91 = scmp.ne.s32.totalorder %s80, %s83
      %p92 = scmp.eq.s32.totalorder %s22, 1
      %p93 = por %p91, %p92
      %p94 = scmp.ne.s32.totalorder %s83, %s84
      %p95 = scmp.eq.s32.totalorder %s22, 0
      %p96 = por %p94, %p95
      %p97 = scmp.ne.s32.totalorder %s83, %s84
      %p98 = scmp.eq.s32.totalorder %s23, 1
      %p99 = por %p97, %p98
      %p101 = scmp.ne.s32.totalorder %s84, %s100
      %p102 = scmp.eq.s32.totalorder %s23, 0
      %p103 = por %p101, %p102
      %s104 = ssub.s32 %s24, %s43
      %s105 = ssub.s32 %s25, %s39
      %s106 = sor.u32 %s104, %s105
      %p107 = scmp.eq.s32.totalorder %s106, 0
      %s109 = sadd.s32 %s108, 1
      %s110 = scalar_select %p107, %s108, %s109
      %p113 = pneg %p107
      %p114 = scmp.eq.s32.totalorder %s17, 1
      %p115 = por %p113, %p114
      %p116 = scmp.ne.s32.totalorder %s108, %s111
      %p117 = scmp.eq.s32.totalorder %s17, 0
      %p118 = por %p116, %p117
      %p119 = scmp.ne.s32.totalorder %s108, %s111
      %p120 = scmp.eq.s32.totalorder %s22, 1
      %p121 = por %p119, %p120
      %p122 = scmp.ne.s32.totalorder %s111, %s112
      %p123 = scmp.eq.s32.totalorder %s22, 0
      %p124 = por %p122, %p123
      %p125 = scmp.ne.s32.totalorder %s111, %s112
      %p126 = scmp.eq.s32.totalorder %s23, 1
      %p127 = por %p125, %p126
      %p129 = scmp.ne.s32.totalorder %s112, %s128
      %p130 = scmp.eq.s32.totalorder %s23, 0
      %p131 = por %p129, %p130
      %p132 = scmp.le.s32.totalorder 1, %s17
      %p133 = scmp.lt.s32.totalorder %s17, 3
      %p134 = pnand %p132, %p133
      %p135 = pneg %p134
      // Predicated region
      $region9: #{tpu_custom_call.1} parent=5 // pred_check
        _
      $region10: #{tpu_custom_call.1} parent=5 // pred_check_branch
        %137 = sbr.rel (%p134) target = $region12
      $region11: #{tpu_custom_call.1} parent=5 // pred_region
        %s138 = ssub.s32 %s17, 1
      $region12: #{tpu_custom_call.1} parent=5 // pred_fallthru
        _
      %p139 = scmp.lt.s32.totalorder %s17, 2
      // Predicated region
      $region13: #{tpu_custom_call.1} parent=5 // pred_check
        %p140 = pneg %p139
      $region14: #{tpu_custom_call.1} parent=5 // pred_check_branch
        %142 = sbr.rel (%p140) target = $region16
      $region15: #{tpu_custom_call.1} parent=5 // pred_region
        // Predicated region
        $region17: #{tpu_custom_call.1} parent=15 // pred_check
          %p143 = pneg %p60
        $region18: #{tpu_custom_call.1} parent=15 // pred_check_branch
          %145 = sbr.rel (%p143) target = $region20
        $region19: #{tpu_custom_call.1} parent=15 // pred_region
          %s146 = sand.u32 %s50, 1
          %s147 = scalar_lea.sflag [#allocation3], %s146
          %s148 = sand.u32 %s50, 1
          %s149 = smul.addr %s148, 24
          %s150 = scalar_lea.vmem [#allocation2], %s149
          %s151 = sadd.s32 %s25, %s26
          %s153 = ssub.s32 384, 384
          %154 = vsyncadd %s147, %s153
          %s155 = smul.addr %s24, 3
          %s156 = sadd.s32 %s151, %s155
          %s157 = smul.addr %s156, 128
          %s158 = scalar_lea.hbm %s0, %s157
          %s159 = sshll.u32 %s150, 4
          %s160 = int_to_ptr.vmem [resolvable:$true] %s159
          %165 = dma.hbm_to_vmem [thread:$0]  %s158, 384, %s160, %s147, 128, 128, 8
        $region20: #{tpu_custom_call.1} parent=15 // pred_fallthru
          _
        // Predicated region
        $region21: #{tpu_custom_call.1} parent=15 // pred_check
          %p166 = pneg %p90
        $region22: #{tpu_custom_call.1} parent=15 // pred_check_branch
          %168 = sbr.rel (%p166) target = $region24
        $region23: #{tpu_custom_call.1} parent=15 // pred_region
          %s169 = sand.u32 %s80, 1
          %s170 = scalar_lea.sflag [#allocation6], %s169
          %s171 = sand.u32 %s80, 1
          %s172 = smul.addr %s171, 24
          %s173 = scalar_lea.vmem [#allocation5], %s172
          %s174 = sadd.s32 %s25, %s26
          %s176 = ssub.s32 384, 384
          %177 = vsyncadd %s170, %s176
          %s178 = smul.addr %s24, 3
          %s179 = sadd.s32 %s174, %s178
          %s180 = smul.addr %s179, 128
          %s181 = scalar_lea.hbm %s1, %s180
          %s182 = sshll.u32 %s173, 4
          %s183 = int_to_ptr.vmem [resolvable:$true] %s182
          %188 = dma.hbm_to_vmem [thread:$0]  %s181, 384, %s183, %s170, 128, 128, 8
        $region24: #{tpu_custom_call.1} parent=15 // pred_fallthru
          _
      $region16: #{tpu_custom_call.1} parent=5 // pred_fallthru
        _
      %p189 = scmp.le.s32.totalorder 1, %s17
      %p190 = scmp.lt.s32.totalorder %s17, 3
      %p191 = pnand %p189, %p190
      %p192 = pneg %p191
      // Predicated region
      $region25: #{tpu_custom_call.1} parent=5 // pred_check
        _
      $region26: #{tpu_custom_call.1} parent=5 // pred_check_branch
        %194 = sbr.rel (%p191) target = $region28
      $region27: #{tpu_custom_call.1} parent=5 // pred_region
        %s195 = ssub.s32 %s17, 1
        %s196 = sand.u32 %s53, 1
        %s197 = scalar_lea.sflag [#allocation3], %s196
        %s198 = sand.u32 %s53, 1
        %s199 = smul.addr %s198, 24
        %s200 = scalar_lea.vmem [#allocation2], %s199
        // Predicated region
        $region29: #{tpu_custom_call.1} parent=27 // pred_check
          %p201 = pneg %p66
        $region30: #{tpu_custom_call.1} parent=27 // pred_check_branch
          %203 = sbr.rel (%p201) target = $region32
        $region31: #{tpu_custom_call.1} parent=27 // pred_region
          %204 = dma.done %s197, 384
        $region32: #{tpu_custom_call.1} parent=27 // pred_fallthru
          _
        %s205 = sand.u32 %s83, 1
        %s206 = scalar_lea.sflag [#allocation6], %s205
        %s207 = sand.u32 %s83, 1
        %s208 = smul.addr %s207, 24
        %s209 = scalar_lea.vmem [#allocation5], %s208
        // Predicated region
        $region33: #{tpu_custom_call.1} parent=27 // pred_check
          %p210 = pneg %p96
        $region34: #{tpu_custom_call.1} parent=27 // pred_check_branch
          %212 = sbr.rel (%p210) target = $region36
        $region35: #{tpu_custom_call.1} parent=27 // pred_region
          %213 = dma.done %s206, 384
        $region36: #{tpu_custom_call.1} parent=27 // pred_fallthru
          _
        %s214 = sand.u32 %s53, 1
        %s215 = scalar_lea.sflag [#allocation3], %s214
        %s216 = sand.u32 %s53, 1
        %s217 = smul.addr %s216, 24
        %s218 = scalar_lea.vmem [#allocation2], %s217
        %p219 = pneg %p66
        %p220 = pneg %p63
        %s221 = sand.u32 %s83, 1
        %s222 = scalar_lea.sflag [#allocation6], %s221
        %s223 = sand.u32 %s83, 1
        %s224 = smul.addr %s223, 24
        %s225 = scalar_lea.vmem [#allocation5], %s224
        %p226 = pneg %p96
        %p227 = pneg %p93
        %p228 = pneg %p124
        %p229 = pneg %p121
        %s230 = sand.u32 %s111, 1
        %s231 = scalar_lea.sflag [#allocation4], %s230
        %s232 = sand.u32 %s111, 1
        %s233 = smul.addr %s232, 8
        %s234 = scalar_lea.vmem [#allocation7], %s233
        %s235 = sadd.s32 %s28, %s29
        %s236 = sadd.s32 %s28, %s29
        %p237 = scmp.eq.s32.totalorder %s29, 0
        // Predicated region
        $region37: #{tpu_custom_call.1} parent=27 // pred_check
          %p238 = pneg %p237
        $region38: #{tpu_custom_call.1} parent=27 // pred_check_branch
          %240 = sbr.rel (%p238) target = $region40
        $region39: #{tpu_custom_call.1} parent=27 // pred_region
          %241 = vst [vmem:[%s234] sm:$0xff] 0.0
        $region40: #{tpu_custom_call.1} parent=27 // pred_fallthru
          _
        %v242 = vld [vmem:[%s200] sm:$0xff]
        %v243 = vld [vmem:[%s209] sm:$0xff]
        %v244 = vsub.f32 %v242, %v243
        %s245 = scalar_lea.vmem %s200, 8 [#allocation2]
        %v246 = vld [vmem:[%s245] sm:$0xff]
        %s247 = scalar_lea.vmem %s209, 8 [#allocation5]
        %v248 = vld [vmem:[%s247] sm:$0xff]
        %v249 = vsub.f32 %v246, %v248
        %s250 = scalar_lea.vmem %s200, 16 [#allocation2]
        %v251 = vld [vmem:[%s250] sm:$0xff]
        %s252 = scalar_lea.vmem %s209, 16 [#allocation5]
        %v253 = vld [vmem:[%s252] sm:$0xff]
        %v254 = vsub.f32 %v251, %v253
        %v255 = vmul.f32 %v244, 65.481
        %v256 = vmul.f32 %v249, 128.553
        %v257 = vadd.f32 %v255, %v256
        %v258 = vmul.f32 %v254, 24.966
        %v259 = vadd.f32 %v257, %v258
        %v260 = vmul.f32 %v259, %v259
        %v261 = vmul.f32 %v244, -37.797
        %v262 = vmul.f32 %v249, -74.203
        %v263 = vadd.f32 %v261, %v262
        %v264 = vmul.f32 %v254, 112.0
        %v265 = vadd.f32 %v263, %v264
        %v266 = vmul.f32 %v265, %v265
        %v267 = vadd.f32 %v260, %v266
        %v268 = vmul.f32 %v244, 112.0
        %v269 = vmul.f32 %v249, -93.786
        %v270 = vadd.f32 %v268, %v269
        %v271 = vmul.f32 %v254, -18.214
        %v272 = vadd.f32 %v270, %v271
        %v273 = vmul.f32 %v272, %v272
        %v274 = vadd.f32 %v267, %v273
        %v275 = vadd.f32 %v274, 0.0
        %v276 = vld [vmem:[%s234] sm:$0xff]
        %v277 = vadd.f32 %v276, %v275
        %278 = vst [vmem:[%s234] sm:$0xff] %v277
        %s279 = sand.u32 %s111, 1
        %s280 = scalar_lea.sflag [#allocation4], %s279
        %s281 = sand.u32 %s111, 1
        %s282 = smul.addr %s281, 8
        %s283 = scalar_lea.vmem [#allocation7], %s282
        // Predicated region
        $region41: #{tpu_custom_call.1} parent=27 // pred_check
          %p284 = pneg %p121
        $region42: #{tpu_custom_call.1} parent=27 // pred_check_branch
          %286 = sbr.rel (%p284) target = $region44
        $region43: #{tpu_custom_call.1} parent=27 // pred_region
          %s288 = ssub.s32 128, 128
          %289 = vsyncadd %s280, %s288
          %s290 = sadd.s32 %s28, %s27
          %s291 = smul.addr %s290, 128
          %s292 = scalar_lea.hbm %s2, %s291
          %s294 = sshll.u32 %s283, 4
          %s295 = int_to_ptr.vmem [resolvable:$true] %s294
          %297 = dma.vmem_to_hbm [thread:$0]  %s295, 128, %s292, %s280
        $region44: #{tpu_custom_call.1} parent=27 // pred_fallthru
          _
      $region28: #{tpu_custom_call.1} parent=5 // pred_fallthru
        _
      %p298 = scmp.le.s32.totalorder 2, %s17
      // Predicated region
      $region45: #{tpu_custom_call.1} parent=5 // pred_check
        %p299 = pneg %p298
      $region46: #{tpu_custom_call.1} parent=5 // pred_check_branch
        %301 = sbr.rel (%p299) target = $region48
      $region47: #{tpu_custom_call.1} parent=5 // pred_region
        %s302 = ssub.s32 %s17, 2
        // Predicated region
        $region49: #{tpu_custom_call.1} parent=47 // pred_check
          %p303 = pneg %p127
        $region50: #{tpu_custom_call.1} parent=47 // pred_check_branch
          %305 = sbr.rel (%p303) target = $region52
        $region51: #{tpu_custom_call.1} parent=47 // pred_region
          %s306 = sand.u32 %s112, 1
          %s307 = scalar_lea.sflag [#allocation4], %s306
          %s308 = sand.u32 %s112, 1
          %s309 = smul.addr %s308, 8
          %s310 = scalar_lea.vmem [#allocation7], %s309
          %311 = dma.done %s307, 128
        $region52: #{tpu_custom_call.1} parent=47 // pred_fallthru
          _
      $region48: #{tpu_custom_call.1} parent=5 // pred_fallthru
        _
    $region6: #{tpu_custom_call.1} parent=1 // loop_footer
      %s21 = sadd.s32 1, %s17
    $region7: #{tpu_custom_call.1} parent=1 // loop_footer_branch
      %16 = sbr.rel target = $region3
    $region8: #{tpu_custom_call.1} parent=1 // loop_exit
      _
    %312 = vsyncpa [#allocation3], 1
    %s313 = scalar_lea.sflag [#allocation3], 1
    %314 = vsyncpa %s313, 1
    %315 = vsyncpa [#allocation6], 1
    %s316 = scalar_lea.sflag [#allocation6], 1
    %317 = vsyncpa %s316, 1
    %318 = vsyncpa [#allocation4], 1
    %s319 = scalar_lea.sflag [#allocation4], 1
    %320 = vsyncpa %s319, 1

</llo_original>
